<compile_context>
chip_gen: v6e
topology: v6e:2x2x1
jax: 0.10.0
libtpu: 0.0.40
codegen_flags: <defaults>
</compile_context>

<pallas_src>
import functools

import jax
import jax.numpy as jnp
from jax.experimental import pallas as pl
from jax.experimental.pallas import tpu as pltpu

_LANES = 128
_VMEM_LIMIT_BYTES = 48 << 20     # scoped-VMEM limit; fits all of v5e/v6e/v7x
_TARGET_BLOCK_BYTES = 4 << 20    # ~4 MiB blocks: near-peak pipelined-copy eff.
_MAX_BLOCK_BYTES = 5 << 20       # hard cap on the minimum legal block


def _bn_frame_kernel(x_ref, w_ref, b_ref, o_ref, *, eps, inv_n, n_pad, two_pass):
    # x_ref: (1, B, tc, HWp)  -- one time frame, one tile of channels.
    # w_ref, b_ref: (tc, 1)   -- affine params for this channel tile.
    xf = x_ref[...].astype(jnp.float32)

    # Per-channel reductions: batch axis first (VPU adds across major-dim
    # slices), then the lane axis (single XLU reduce).
    sum_b = jnp.sum(xf, axis=1, keepdims=True)                # (1,1,tc,HWp)
    mean = jnp.sum(sum_b, axis=3, keepdims=True) * inv_n      # (1,1,tc,1)

    if two_pass:
        cen = xf - mean
        ssq_b = jnp.sum(cen * cen, axis=1, keepdims=True)
        ssq = jnp.sum(ssq_b, axis=3, keepdims=True)
        if n_pad:
            # Zero-padded lanes each contribute (0 - mean)^2; remove them.
            ssq = ssq - float(n_pad) * (mean * mean)
        var = ssq * inv_n
    else:
        # Single pass: var = E[x^2] - mean^2.  Zero padding adds nothing to
        # either sum and inv_n uses the true element count, so no bias.
        ssq_b = jnp.sum(xf * xf, axis=1, keepdims=True)
        ssq = jnp.sum(ssq_b, axis=3, keepdims=True)
        var = ssq * inv_n - mean * mean
    var = jnp.maximum(var, 0.0)

    inv_std = jax.lax.rsqrt(var + eps)

    # Fold the affine into per-channel scale/shift: y = x*scale + shift.
    w = w_ref[...].reshape(1, 1, -1, 1)
    b = b_ref[...].reshape(1, 1, -1, 1)
    scale = w * inv_std
    shift = b - mean * scale

    # Re-read x (upcast per-use) rather than keeping the f32 block copy live
    # through the normalize pass.
    o_ref[...] = (x_ref[...].astype(jnp.float32) * scale + shift).astype(o_ref.dtype)


def _pick_channel_tile(C, bytes_per_channel, t_steps):
    """Channel-tile size: largest multiple-of-8 divisor of C whose block fits
    the target (preferring the fully-contiguous full-frame block tc=C), with a
    v7x megacore fallback and a hard VMEM-budget check."""
    full_bytes = C * bytes_per_channel
    if C % 8 != 0:
        # Second-to-last block dim must be a multiple of 8 or the full dim.
        tc = C
    elif full_bytes <= _TARGET_BLOCK_BYTES:
        tc = C                       # fully contiguous HBM DMA per frame
    else:
        tc = 8
        for cand in range(8, C, 8):
            if C % cand == 0 and cand * bytes_per_channel <= _TARGET_BLOCK_BYTES:
                tc = cand
    # v7x has 2 TensorCores; guarantee at least 2 grid blocks when possible.
    if t_steps * (C // tc) < 2 and tc % 16 == 0:
        tc //= 2
    if tc * bytes_per_channel > _MAX_BLOCK_BYTES:
        # TODO(synk): add a second tiling level over (B, HW) with a two-phase
        # reduce-then-normalize grid for very large per-channel frames.
        raise NotImplementedError(
            "BatchNorm frame block (%d channels x %d bytes) exceeds the VMEM "
            "budget; reduction-dimension tiling is not implemented."
            % (tc, bytes_per_channel))
    return tc


def batch_norm_snn(x, weight, bias, eps=1e-5, *, two_pass=False):
    """x: [T, B, C, H, W] -> [T, B, C, H, W]; per-frame BatchNorm2d, batch stats."""
    T, B, C, H, W = x.shape
    HW = H * W
    HWp = ((HW + _LANES - 1) // _LANES) * _LANES
    pad = HWp - HW

    # Free reshape of contiguous NCHW; pad lanes only when HW is not 128-dense.
    x4 = x.reshape(T, B, C, HW)
    if pad:
        x4 = jnp.pad(x4, ((0, 0), (0, 0), (0, 0), (0, pad)))
    w2 = weight.reshape(C, 1).astype(jnp.float32)
    b2 = bias.reshape(C, 1).astype(jnp.float32)

    itemsize = jnp.dtype(x.dtype).itemsize
    tc = _pick_channel_tile(C, B * HWp * itemsize, T)
    n_ct = C // tc

    inv_n = 1.0 / float(B * HW)      # true element count (padding excluded)
    n_pad = B * pad                  # zero-padded elements per channel

    kernel = functools.partial(_bn_frame_kernel, eps=float(eps), inv_n=inv_n,
                               n_pad=n_pad, two_pass=two_pass)

    elems = T * B * C * HW
    cost = pl.CostEstimate(
        flops=5 * elems,                       # sum/sumsq + fused scale/shift
        transcendentals=T * C,                 # one rsqrt per (frame, channel)
        bytes_accessed=2 * elems * itemsize,   # read x, write y
    )

    out4 = pl.pallas_call(
        kernel,
        out_shape=jax.ShapeDtypeStruct((T, B, C, HWp), x.dtype),
        grid_spec=pltpu.PrefetchScalarGridSpec(
            num_scalar_prefetch=0,
            grid=(n_ct, T),   # T innermost: param blocks keep the same index
            in_specs=[
                pl.BlockSpec((1, B, tc, HWp), lambda c, t: (t, 0, c, 0)),
                pl.BlockSpec((tc, 1), lambda c, t: (c, 0)),
                pl.BlockSpec((tc, 1), lambda c, t: (c, 0)),
            ],
            out_specs=pl.BlockSpec((1, B, tc, HWp), lambda c, t: (t, 0, c, 0)),
        ),
        compiler_params=pltpu.CompilerParams(
            dimension_semantics=("parallel", "parallel"),
            vmem_limit_bytes=_VMEM_LIMIT_BYTES),
        cost_estimate=cost,
    )(x4, w2, b2)

    if pad:
        out4 = out4[..., :HW]
    return out4.reshape(T, B, C, H, W)


def _reference(x, weight, bias, eps=1e-5):
    # Pure-JAX reference: per frame, per channel over (B, H, W), biased var.
    mean = jnp.mean(x, axis=(1, 3, 4), keepdims=True)
    var = jnp.mean((x - mean) ** 2, axis=(1, 3, 4), keepdims=True)
    w = weight.reshape(1, 1, -1, 1, 1)
    b = bias.reshape(1, 1, -1, 1, 1)
    return (x - mean) / jnp.sqrt(var + eps) * w + b


if __name__ == "__main__":
    # TODO(synk): running_mean/running_var momentum updates (stateful buffers)
    # are not modeled; the forward uses batch statistics (training mode).
    key = jax.random.PRNGKey(0)

    def _check(T, B, C, H, W):
        k = jax.random.fold_in(key, C * 1000 + H)
        kx, kw, kb = jax.random.split(k, 3)
        x = jax.random.normal(kx, (T, B, C, H, W), dtype=jnp.float32)
        # BatchNorm2d default init is weight=1, bias=0; use deterministic
        # random values to exercise the affine path.
        weight = 1.0 + 0.1 * jax.random.normal(kw, (C,), dtype=jnp.float32)
        bias = 0.1 * jax.random.normal(kb, (C,), dtype=jnp.float32)
        out = jax.block_until_ready(batch_norm_snn(x, weight, bias))
        ref = _reference(x, weight, bias)
        assert out.shape == (T, B, C, H, W)
        assert jnp.allclose(out, ref, atol=5e-5, rtol=5e-5), "mismatch vs reference"

    _check(3, 2, 4, 16, 16)   # lane-dense HW=256, C not a multiple of 8
    _check(2, 2, 8, 7, 7)     # HW=49 -> zero-padded to 128 lanes
    print("KERNEL_OK")
</pallas_src>

<mosaic_0001>
module attributes {stable_mosaic.version = 11 : i64} {
  func.func @_bn_frame_kernel(%arg0: i32, %arg1: i32, %arg2: memref<1x2x4x256xf32, #tpu.memory_space<vmem>>, %arg3: memref<4x1xf32, #tpu.memory_space<vmem>>, %arg4: memref<4x1xf32, #tpu.memory_space<vmem>>, %arg5: memref<1x2x4x256xf32, #tpu.memory_space<vmem>>) attributes {dimension_semantics = [#tpu.dimension_semantics<parallel>, #tpu.dimension_semantics<parallel>], iteration_bounds = array<i64: 1, 3>, scalar_prefetch = 0 : i64, scratch_operands = 0 : i64, tpu.core_type = #tpu.core_type<tc>, window_params = [{transform_indices = @transform_0, window_bounds = array<i64: 1, 2, 4, 256>}, {transform_indices = @transform_1, window_bounds = array<i64: 4, 1>}, {transform_indices = @transform_2, window_bounds = array<i64: 4, 1>}, {transform_indices = @transform_3, window_bounds = array<i64: 1, 2, 4, 256>}]} {
    %c0 = arith.constant 0 : index
    %c0_0 = arith.constant 0 : index
    %c0_1 = arith.constant 0 : index
    %c0_2 = arith.constant 0 : index
    %0 = vector.load %arg2[%c0, %c0_0, %c0_1, %c0_2] : memref<1x2x4x256xf32, #tpu.memory_space<vmem>>, vector<1x2x4x256xf32>
    %cst = arith.constant dense<0.000000e+00> : vector<1x4x256xf32>
    %1 = vector.multi_reduction <add>, %0, %cst [1] : vector<1x2x4x256xf32> to vector<1x4x256xf32>
    %2 = vector.shape_cast %1 : vector<1x4x256xf32> to vector<1x1x4x256xf32>
    %cst_3 = arith.constant dense<0.000000e+00> : vector<1x1x4xf32>
    %3 = vector.multi_reduction <add>, %2, %cst_3 [3] : vector<1x1x4x256xf32> to vector<1x1x4xf32>
    %4 = vector.shape_cast %3 : vector<1x1x4xf32> to vector<1x1x4x1xf32>
    %cst_4 = arith.constant 0.001953125 : f32
    %5 = vector.broadcast %cst_4 : f32 to vector<1x1x4x1xf32>
    %6 = arith.mulf %4, %5 : vector<1x1x4x1xf32>
    %7 = arith.mulf %0, %0 : vector<1x2x4x256xf32>
    %cst_5 = arith.constant dense<0.000000e+00> : vector<1x4x256xf32>
    %8 = vector.multi_reduction <add>, %7, %cst_5 [1] : vector<1x2x4x256xf32> to vector<1x4x256xf32>
    %9 = vector.shape_cast %8 : vector<1x4x256xf32> to vector<1x1x4x256xf32>
    %cst_6 = arith.constant dense<0.000000e+00> : vector<1x1x4xf32>
    %10 = vector.multi_reduction <add>, %9, %cst_6 [3] : vector<1x1x4x256xf32> to vector<1x1x4xf32>
    %11 = vector.shape_cast %10 : vector<1x1x4xf32> to vector<1x1x4x1xf32>
    %cst_7 = arith.constant 0.001953125 : f32
    %12 = vector.broadcast %cst_7 : f32 to vector<1x1x4x1xf32>
    %13 = arith.mulf %11, %12 : vector<1x1x4x1xf32>
    %14 = arith.mulf %6, %6 : vector<1x1x4x1xf32>
    %15 = arith.subf %13, %14 : vector<1x1x4x1xf32>
    %cst_8 = arith.constant 0.000000e+00 : f32
    %16 = vector.broadcast %cst_8 : f32 to vector<1x1x4x1xf32>
    %17 = arith.maximumf %15, %16 : vector<1x1x4x1xf32>
    %cst_9 = arith.constant 9.99999974E-6 : f32
    %18 = vector.broadcast %cst_9 : f32 to vector<1x1x4x1xf32>
    %19 = arith.addf %17, %18 : vector<1x1x4x1xf32>
    %20 = math.rsqrt %19 : vector<1x1x4x1xf32>
    %c0_10 = arith.constant 0 : index
    %c0_11 = arith.constant 0 : index
    %21 = vector.load %arg3[%c0_10, %c0_11] : memref<4x1xf32, #tpu.memory_space<vmem>>, vector<4x1xf32>
    %22 = vector.shape_cast %21 : vector<4x1xf32> to vector<1x1x4x1xf32>
    %c0_12 = arith.constant 0 : index
    %c0_13 = arith.constant 0 : index
    %23 = vector.load %arg4[%c0_12, %c0_13] : memref<4x1xf32, #tpu.memory_space<vmem>>, vector<4x1xf32>
    %24 = vector.shape_cast %23 : vector<4x1xf32> to vector<1x1x4x1xf32>
    %25 = arith.mulf %22, %20 : vector<1x1x4x1xf32>
    %26 = arith.mulf %6, %25 : vector<1x1x4x1xf32>
    %27 = arith.subf %24, %26 : vector<1x1x4x1xf32>
    %c0_14 = arith.constant 0 : index
    %c0_15 = arith.constant 0 : index
    %c0_16 = arith.constant 0 : index
    %c0_17 = arith.constant 0 : index
    %28 = vector.load %arg2[%c0_14, %c0_15, %c0_16, %c0_17] : memref<1x2x4x256xf32, #tpu.memory_space<vmem>>, vector<1x2x4x256xf32>
    %29 = vector.broadcast %25 : vector<1x1x4x1xf32> to vector<1x2x4x256xf32>
    %30 = arith.mulf %28, %29 : vector<1x2x4x256xf32>
    %31 = vector.broadcast %27 : vector<1x1x4x1xf32> to vector<1x2x4x256xf32>
    %32 = arith.addf %30, %31 : vector<1x2x4x256xf32>
    %c0_18 = arith.constant 0 : index
    %c0_19 = arith.constant 0 : index
    %c0_20 = arith.constant 0 : index
    %c0_21 = arith.constant 0 : index
    %33 = vector.load %arg5[%c0_18, %c0_19, %c0_20, %c0_21] : memref<1x2x4x256xf32, #tpu.memory_space<vmem>>, vector<1x2x4x256xf32>
    tpu.vector_store %arg5[%c0_18, %c0_19, %c0_20, %c0_21], %32 {strides = array<i32>} : memref<1x2x4x256xf32, #tpu.memory_space<vmem>>, vector<1x2x4x256xf32>,
    return
  }
  func.func @transform_0(%arg0: i32, %arg1: i32) -> (i32, i32, i32, i32) {
    %c0_i32 = arith.constant 0 : i32
    %c0_i32_0 = arith.constant 0 : i32
    %c0_i32_1 = arith.constant 0 : i32
    return %arg1, %c0_i32, %arg0, %c0_i32_0 : i32, i32, i32, i32
  }
  func.func @transform_1(%arg0: i32, %arg1: i32) -> (i32, i32) {
    %c0_i32 = arith.constant 0 : i32
    %c0_i32_0 = arith.constant 0 : i32
    return %arg0, %c0_i32 : i32, i32
  }
  func.func @transform_2(%arg0: i32, %arg1: i32) -> (i32, i32) {
    %c0_i32 = arith.constant 0 : i32
    %c0_i32_0 = arith.constant 0 : i32
    return %arg0, %c0_i32 : i32, i32
  }
  func.func @transform_3(%arg0: i32, %arg1: i32) -> (i32, i32, i32, i32) {
    %c0_i32 = arith.constant 0 : i32
    %c0_i32_0 = arith.constant 0 : i32
    %c0_i32_1 = arith.constant 0 : i32
    return %arg1, %c0_i32, %arg0, %c0_i32_0 : i32, i32, i32, i32
  }
}

</mosaic_0001>

<llo_original>
// kernel: tpu_custom_call.1
$region0: #{tpu_custom_call.1}
  #allocation0 [shape = 'u32[]', space=smem, size = 0x4, offset = 0x4, fixed_abs, tag = 'smem constant byte address 0x4 - core index']
  #allocation1 [shape = 'u32[144,128]{1,0:T(1,128)}', space=vmem, size = 0x12000, scoped, tag = 'internal scratch']
  %s0 = inlined_call_operand.hbm [shape: f32[3,2,4,256], index: 0, kind: input, shape index: {}]
  %s1 = inlined_call_operand.vmem [shape: f32[4,1], index: 1, kind: input, shape index: {}]
  %s2 = inlined_call_operand.vmem [shape: f32[4,1], index: 2, kind: input, shape index: {}]
  %s3 = inlined_call_operand.hbm [shape: f32[3,2,4,256], index: 3, kind: output, shape index: {}]
  %s4 = sld [smem:[#allocation0]]
  $region49: #{tpu_custom_call.1} parent=0
    _
  %s6 = ssub.s32 1, %s4
  %s7 = scalar_select 0, %s6, %s4
  $region1: #{tpu_custom_call.1} parent=0
    #allocation2 [shape = 'u8[16384]{0}', space=vmem, size = 0x4000, scoped, tag = 'input window, operand 0']
    #allocation3 [shape = 's32[2]{0}', space=sflag, size = 0x8, scoped, tag = 'scoped memory for tpu_custom_call.1']
    #allocation4 [shape = 's32[2]{0}', space=sflag, size = 0x8, scoped, tag = 'scoped memory for tpu_custom_call.1']
    #allocation5 [shape = 'u8[16384]{0}', space=vmem, size = 0x4000, scoped, tag = 'output window, operand 0']
    %8 = vsyncpa [#allocation3], 0
    %s9 = scalar_lea.sflag [#allocation3], 1
    %10 = vsyncpa %s9, 0
    %11 = vsyncpa [#allocation4], 0
    %s12 = scalar_lea.sflag [#allocation4], 1
    %13 = vsyncpa %s12, 0
    loop: start=0, step=1, limit=5
    $region2: #{tpu_custom_call.1} parent=1 // loop_pre_header
      _
    $region3: #{tpu_custom_call.1} parent=1 // loop_header
      %s15 = sphi 0, %s19
      %p16 = scmp.ge.s32.totalorder %s15, 5
      %s22 = sphi 0, %s34
      %s23 = sphi 0, %s30
      %s24 = sphi 0, %s22
      %s25 = sphi 0, %s23
      %s26 = sphi 0, %s24
      %s27 = sphi 0, %s25
      %s39 = sphi 0, %s41
      %s42 = sphi 0, %s39
      %s43 = sphi 0, %s42
      %s59 = sphi 0, %s43
      %s65 = sphi 0, %s67
      %s68 = sphi 0, %s65
      %s69 = sphi 0, %s68
      %s85 = sphi 0, %s69
      %s91 = sphi 0, %s93
      %s94 = sphi 0, %s91
      %s95 = sphi 0, %s94
      %s111 = sphi 0, %s95
      %s119 = sphi 0, %s121
      %s122 = sphi 0, %s119
      %s123 = sphi 0, %s122
      %s139 = sphi 0, %s123
    $region4: #{tpu_custom_call.1} parent=1 // loop_header_branch
      %18 = sbr.rel (%p16) target = $region8
    $region5: #{tpu_custom_call.1} parent=1 // loop_body
      %s20 = ssub.s32 %s15, 1
      %s21 = ssub.s32 %s15, 2
      %s28 = sadd.s32 1, %s23
      %p29 = scmp.ge.s32.totalorder %s28, 3
      %s30 = scalar_select %p29, 0, %s28
      %s31 = sadd.s32 1, %s22
      %s32 = scalar_select %p29, %s31, %s22
      %p33 = scmp.ge.s32.totalorder %s32, 1
      %s34 = scalar_select %p33, 0, %s32
      %s35 = ssub.s32 %s23, %s30
      %s36 = ssub.s32 %s22, %s34
      %s37 = sor.u32 %s35, %s36
      %p38 = scmp.eq.s32.totalorder %s37, 0
      %s40 = sadd.s32 %s39, 1
      %s41 = scalar_select %p38, %s39, %s40
      %p44 = pneg %p38
      %p45 = scmp.eq.s32.totalorder %s15, 2
      %p46 = por %p44, %p45
      %p47 = scmp.ne.s32.totalorder %s39, %s42
      %p48 = scmp.eq.s32.totalorder %s15, 0
      %p49 = por %p47, %p48
      %p50 = scmp.ne.s32.totalorder %s39, %s42
      %p51 = scmp.eq.s32.totalorder %s20, 2
      %p52 = por %p50, %p51
      %p53 = scmp.ne.s32.totalorder %s42, %s43
      %p54 = scmp.eq.s32.totalorder %s20, 0
      %p55 = por %p53, %p54
      %p56 = scmp.ne.s32.totalorder %s42, %s43
      %p57 = scmp.eq.s32.totalorder %s21, 2
      %p58 = por %p56, %p57
      %p60 = scmp.ne.s32.totalorder %s43, %s59
      %p61 = scmp.eq.s32.totalorder %s21, 0
      %p62 = por %p60, %p61
      %s63 = ssub.s32 %s22, %s34
      %p64 = scmp.eq.s32.totalorder %s63, 0
      %s66 = sadd.s32 %s65, 1
      %s67 = scalar_select %p64, %s65, %s66
      %p70 = pneg %p64
      %p71 = scmp.eq.s32.totalorder %s15, 2
      %p72 = por %p70, %p71
      %p73 = scmp.ne.s32.totalorder %s65, %s68
      %p74 = scmp.eq.s32.totalorder %s15, 0
      %p75 = por %p73, %p74
      %p76 = scmp.ne.s32.totalorder %s65, %s68
      %p77 = scmp.eq.s32.totalorder %s20, 2
      %p78 = por %p76, %p77
      %p79 = scmp.ne.s32.totalorder %s68, %s69
      %p80 = scmp.eq.s32.totalorder %s20, 0
      %p81 = por %p79, %p80
      %p82 = scmp.ne.s32.totalorder %s68, %s69
      %p83 = scmp.eq.s32.totalorder %s21, 2
      %p84 = por %p82, %p83
      %p86 = scmp.ne.s32.totalorder %s69, %s85
      %p87 = scmp.eq.s32.totalorder %s21, 0
      %p88 = por %p86, %p87
      %s89 = ssub.s32 %s22, %s34
      %p90 = scmp.eq.s32.totalorder %s89, 0
      %s92 = sadd.s32 %s91, 1
      %s93 = scalar_select %p90, %s91, %s92
      %p96 = pneg %p90
      %p97 = scmp.eq.s32.totalorder %s15, 2
      %p98 = por %p96, %p97
      %p99 = scmp.ne.s32.totalorder %s91, %s94
      %p100 = scmp.eq.s32.totalorder %s15, 0
      %p101 = por %p99, %p100
      %p102 = scmp.ne.s32.totalorder %s91, %s94
      %p103 = scmp.eq.s32.totalorder %s20, 2
      %p104 = por %p102, %p103
      %p105 = scmp.ne.s32.totalorder %s94, %s95
      %p106 = scmp.eq.s32.totalorder %s20, 0
      %p107 = por %p105, %p106
      %p108 = scmp.ne.s32.totalorder %s94, %s95
      %p109 = scmp.eq.s32.totalorder %s21, 2
      %p110 = por %p108, %p109
      %p112 = scmp.ne.s32.totalorder %s95, %s111
      %p113 = scmp.eq.s32.totalorder %s21, 0
      %p114 = por %p112, %p113
      %s115 = ssub.s32 %s23, %s30
      %s116 = ssub.s32 %s22, %s34
      %s117 = sor.u32 %s115, %s116
      %p118 = scmp.eq.s32.totalorder %s117, 0
      %s120 = sadd.s32 %s119, 1
      %s121 = scalar_select %p118, %s119, %s120
      %p124 = pneg %p118
      %p125 = scmp.eq.s32.totalorder %s15, 2
      %p126 = por %p124, %p125
      %p127 = scmp.ne.s32.totalorder %s119, %s122
      %p128 = scmp.eq.s32.totalorder %s15, 0
      %p129 = por %p127, %p128
      %p130 = scmp.ne.s32.totalorder %s119, %s122
      %p131 = scmp.eq.s32.totalorder %s20, 2
      %p132 = por %p130, %p131
      %p133 = scmp.ne.s32.totalorder %s122, %s123
      %p134 = scmp.eq.s32.totalorder %s20, 0
      %p135 = por %p133, %p134
      %p136 = scmp.ne.s32.totalorder %s122, %s123
      %p137 = scmp.eq.s32.totalorder %s21, 2
      %p138 = por %p136, %p137
      %p140 = scmp.ne.s32.totalorder %s123, %s139
      %p141 = scmp.eq.s32.totalorder %s21, 0
      %p142 = por %p140, %p141
      %p143 = scmp.le.s32.totalorder 1, %s15
      %p144 = scmp.lt.s32.totalorder %s15, 4
      %p145 = pnand %p143, %p144
      %p146 = pneg %p145
      // Predicated region
      $region9: #{tpu_custom_call.1} parent=5 // pred_check
        _
      $region10: #{tpu_custom_call.1} parent=5 // pred_check_branch
        %148 = sbr.rel (%p145) target = $region12
      $region11: #{tpu_custom_call.1} parent=5 // pred_region
        %s149 = ssub.s32 %s15, 1
        // Predicated region
        $region13: #{tpu_custom_call.1} parent=11 // pred_check
          %p150 = pneg %p81
        $region14: #{tpu_custom_call.1} parent=11 // pred_check_branch
          %152 = sbr.rel (%p150) target = $region16
        $region15: #{tpu_custom_call.1} parent=11 // pred_region
          %p153 = scmp.lt.s32.totalorder %s24, 0
          %s154 = scalar_select %p153, %s24, 0
          %s155 = smul.addr %s154, 4
          %s156 = scalar_lea.vmem %s1, %s155
        $region16: #{tpu_custom_call.1} parent=11 // pred_fallthru
          _
        // Predicated region
        $region17: #{tpu_custom_call.1} parent=11 // pred_check
          %p157 = pneg %p107
        $region18: #{tpu_custom_call.1} parent=11 // pred_check_branch
          %159 = sbr.rel (%p157) target = $region20
        $region19: #{tpu_custom_call.1} parent=11 // pred_region
          %p160 = scmp.lt.s32.totalorder %s24, 0
          %s161 = scalar_select %p160, %s24, 0
          %s162 = smul.addr %s161, 4
          %s163 = scalar_lea.vmem %s2, %s162
        $region20: #{tpu_custom_call.1} parent=11 // pred_fallthru
          _
      $region12: #{tpu_custom_call.1} parent=5 // pred_fallthru
        _
      %p164 = scmp.lt.s32.totalorder %s15, 3
      // Predicated region
      $region21: #{tpu_custom_call.1} parent=5 // pred_check
        %p165 = pneg %p164
      $region22: #{tpu_custom_call.1} parent=5 // pred_check_branch
        %167 = sbr.rel (%p165) target = $region24
      $region23: #{tpu_custom_call.1} parent=5 // pred_region
        // Predicated region
        $region25: #{tpu_custom_call.1} parent=23 // pred_check
          %p168 = pneg %p49
        $region26: #{tpu_custom_call.1} parent=23 // pred_check_branch
          %170 = sbr.rel (%p168) target = $region28
        $region27: #{tpu_custom_call.1} parent=23 // pred_region
          %s171 = sand.u32 %s39, 1
          %s172 = scalar_lea.sflag [#allocation3], %s171
          %s173 = sand.u32 %s39, 1
          %s174 = smul.addr %s173, 16
          %s175 = scalar_lea.vmem [#allocation2], %s174
          %s177 = ssub.s32 256, 256
          %178 = vsyncadd %s172, %s177
          %s179 = smul.addr %s22, 2
          %s180 = smul.addr %s23, 4
          %s181 = sadd.s32 %s179, %s180
          %s182 = smul.addr %s181, 64
          %s183 = scalar_lea.hbm %s0, %s182
          %s184 = sshll.u32 %s175, 4
          %s185 = int_to_ptr.vmem [resolvable:$true] %s184
          %190 = dma.hbm_to_vmem [thread:$0]  %s183, 256, %s185, %s172, 128, 128, 8
        $region28: #{tpu_custom_call.1} parent=23 // pred_fallthru
          _
      $region24: #{tpu_custom_call.1} parent=5 // pred_fallthru
        _
      %p191 = scmp.le.s32.totalorder 1, %s15
      %p192 = scmp.lt.s32.totalorder %s15, 4
      %p193 = pnand %p191, %p192
      %p194 = pneg %p193
      // Predicated region
      $region29: #{tpu_custom_call.1} parent=5 // pred_check
        _
      $region30: #{tpu_custom_call.1} parent=5 // pred_check_branch
        %196 = sbr.rel (%p193) target = $region32
      $region31: #{tpu_custom_call.1} parent=5 // pred_region
        %s197 = ssub.s32 %s15, 1
        %s198 = sand.u32 %s42, 1
        %s199 = scalar_lea.sflag [#allocation3], %s198
        %s200 = sand.u32 %s42, 1
        %s201 = smul.addr %s200, 16
        %s202 = scalar_lea.vmem [#allocation2], %s201
        // Predicated region
        $region33: #{tpu_custom_call.1} parent=31 // pred_check
          %p203 = pneg %p55
        $region34: #{tpu_custom_call.1} parent=31 // pred_check_branch
          %205 = sbr.rel (%p203) target = $region36
        $region35: #{tpu_custom_call.1} parent=31 // pred_region
          %206 = dma.done %s199, 256
        $region36: #{tpu_custom_call.1} parent=31 // pred_fallthru
          _
        %s207 = sand.u32 %s42, 1
        %s208 = scalar_lea.sflag [#allocation3], %s207
        %s209 = sand.u32 %s42, 1
        %s210 = smul.addr %s209, 16
        %s211 = scalar_lea.vmem [#allocation2], %s210
        %p212 = pneg %p55
        %p213 = pneg %p52
        %p214 = scmp.lt.s32.totalorder %s24, 0
        %s215 = scalar_select %p214, %s24, 0
        %s216 = smul.addr %s215, 4
        %s217 = scalar_lea.vmem %s1, %s216
        %p218 = pneg %p81
        %p219 = pneg %p78
        %p220 = scmp.lt.s32.totalorder %s24, 0
        %s221 = scalar_select %p220, %s24, 0
        %s222 = smul.addr %s221, 4
        %s223 = scalar_lea.vmem %s2, %s222
        %p224 = pneg %p107
        %p225 = pneg %p104
        %p226 = pneg %p135
        %p227 = pneg %p132
        %s228 = sand.u32 %s122, 1
        %s229 = scalar_lea.sflag [#allocation4], %s228
        %s230 = sand.u32 %s122, 1
        %s231 = smul.addr %s230, 16
        %s232 = scalar_lea.vmem [#allocation5], %s231
        %p233 = scmp.lt.s32.totalorder %s24, 0
        %s234 = scalar_select %p233, %s24, 0
        %s235 = smul.addr %s234, 4
        %s236 = scalar_lea.vmem %s1, %s235
        %p237 = scmp.lt.s32.totalorder %s24, 0
        %s238 = scalar_select %p237, %s24, 0
        %s239 = smul.addr %s238, 4
        %s240 = scalar_lea.vmem %s2, %s239
        %v241 = vld [vmem:[%s202] sm:$0xff]
        %v242 = vld [vmem:[%s202 + $0x8] sm:$0xff]
        %v245 = vcombine.high %v241, %v241
        %v246 = vcombine.high %v242, %v242
        %vm249 = vcmask 1043456
        %v250 = vsel %vm249, %v241, 0.0
        %v251 = vsel %vm249, %v242, 0.0
        %v252 = vadd.f32 %v250, %v251
        %v253 = vsel %vm249, %v245, 0.0
        %v254 = vsel %vm249, %v246, 0.0
        %v255 = vadd.f32 %v253, %v254
        %v256 = vsel %vm249, %v252, 0.0
        %v257 = vsel %vm249, %v255, 0.0
        %v258 = vadd.f32 %v256, %v257
        %259 = vadd.xlane.f32.xlu0 %v258
        %v260 = vpop.xlane.xlu0 %259
        %v261 = vmul.f32 %v260, 0.001953125
        %v262 = vmul.f32 %v241, %v241
        %v263 = vmul.f32 %v242, %v242
        %v266 = vcombine.high %v262, %v262
        %v267 = vcombine.high %v263, %v263
        %v270 = vsel %vm249, %v262, 0.0
        %v271 = vsel %vm249, %v263, 0.0
        %v272 = vadd.f32 %v270, %v271
        %v273 = vsel %vm249, %v266, 0.0
        %v274 = vsel %vm249, %v267, 0.0
        %v275 = vadd.f32 %v273, %v274
        %v276 = vsel %vm249, %v272, 0.0
        %v277 = vsel %vm249, %v275, 0.0
        %v278 = vadd.f32 %v276, %v277
        %279 = vadd.xlane.f32.xlu0 %v278
        %v280 = vpop.xlane.xlu0 %279
        %v281 = vmul.f32 %v280, 0.001953125
        %v282 = vmul.f32 %v261, %v261
        %v283 = vsub.f32 %v281, %v282
        %v284 = vmax.f32 %v283, 0.0
        %v285 = vadd.f32 %v284, 1e-05
        %v286 = vrsqrt.pop %v285
        %v287 = vld [vmem:[%s236] sm:$0xf]
        %v288 = vld [vmem:[%s240] sm:$0xf]
        %v289 = vmul.f32 %v287, %v286
        %v290 = vmul.f32 %v261, %v289
        %v291 = vsub.f32 %v288, %v290
        %293 = vset.pattern.permute.xlu0 0
        %294 = vperm.xlu0 %293, %v289
        %v295 = vpop.permute.xlu0 %294
        %v297 = vunpack.c.l.s4 839922192
        %v298 = vunpack.c.0.s8 %v297
        %v299 = vlaneseq
        %v300 = vshrl.u32 %v299, 7
        %v301 = vsub.s32 %v298, %v300
        %v302 = vrot.slane %v295, %v301
        %v304 = vmul.f32 %v241, %v302
        %v305 = vmul.f32 %v242, %v302
        %307 = vset.pattern.permute.xlu0 0
        %308 = vperm.xlu0 %307, %v291
        %v309 = vpop.permute.xlu0 %308
        %v311 = vunpack.c.l.s4 839922192
        %v312 = vunpack.c.0.s8 %v311
        %v313 = vlaneseq
        %v314 = vshrl.u32 %v313, 7
        %v315 = vsub.s32 %v312, %v314
        %v316 = vrot.slane %v309, %v315
        %v318 = vadd.f32 %v304, %v316
        %v319 = vadd.f32 %v305, %v316
        %320 = vst [vmem:[%s232] sm:$0xff] %v318
        %321 = vst [vmem:[%s232 + $0x8] sm:$0xff] %v319
        %s322 = sand.u32 %s122, 1
        %s323 = scalar_lea.sflag [#allocation4], %s322
        %s324 = sand.u32 %s122, 1
        %s325 = smul.addr %s324, 16
        %s326 = scalar_lea.vmem [#allocation5], %s325
        // Predicated region
        $region37: #{tpu_custom_call.1} parent=31 // pred_check
          %p327 = pneg %p132
        $region38: #{tpu_custom_call.1} parent=31 // pred_check_branch
          %329 = sbr.rel (%p327) target = $region40
        $region39: #{tpu_custom_call.1} parent=31 // pred_region
          %s331 = ssub.s32 256, 256
          %332 = vsyncadd %s323, %s331
          %s333 = smul.addr %s24, 2
          %s334 = smul.addr %s25, 4
          %s335 = sadd.s32 %s333, %s334
          %s336 = smul.addr %s335, 64
          %s337 = scalar_lea.hbm %s3, %s336
          %s338 = sshll.u32 %s326, 4
          %s339 = int_to_ptr.vmem [resolvable:$true] %s338
          %344 = dma.vmem_to_hbm [thread:$0]  %s339, 256, %s337, %s323, 128, 128, 8
        $region40: #{tpu_custom_call.1} parent=31 // pred_fallthru
          _
      $region32: #{tpu_custom_call.1} parent=5 // pred_fallthru
        _
      %p345 = scmp.le.s32.totalorder 2, %s15
      // Predicated region
      $region41: #{tpu_custom_call.1} parent=5 // pred_check
        %p346 = pneg %p345
      $region42: #{tpu_custom_call.1} parent=5 // pred_check_branch
        %348 = sbr.rel (%p346) target = $region44
      $region43: #{tpu_custom_call.1} parent=5 // pred_region
        %s349 = ssub.s32 %s15, 2
        // Predicated region
        $region45: #{tpu_custom_call.1} parent=43 // pred_check
          %p350 = pneg %p138
        $region46: #{tpu_custom_call.1} parent=43 // pred_check_branch
          %352 = sbr.rel (%p350) target = $region48
        $region47: #{tpu_custom_call.1} parent=43 // pred_region
          %s353 = sand.u32 %s123, 1
          %s354 = scalar_lea.sflag [#allocation4], %s353
          %s355 = sand.u32 %s123, 1
          %s356 = smul.addr %s355, 16
          %s357 = scalar_lea.vmem [#allocation5], %s356
          %358 = dma.done %s354, 256
        $region48: #{tpu_custom_call.1} parent=43 // pred_fallthru
          _
      $region44: #{tpu_custom_call.1} parent=5 // pred_fallthru
        _
    $region6: #{tpu_custom_call.1} parent=1 // loop_footer
      %s19 = sadd.s32 1, %s15
    $region7: #{tpu_custom_call.1} parent=1 // loop_footer_branch
      %14 = sbr.rel target = $region3
    $region8: #{tpu_custom_call.1} parent=1 // loop_exit
      _
    %359 = vsyncpa [#allocation3], 1
    %s360 = scalar_lea.sflag [#allocation3], 1
    %361 = vsyncpa %s360, 1
    %362 = vsyncpa [#allocation4], 1
    %s363 = scalar_lea.sflag [#allocation4], 1
    %364 = vsyncpa %s363, 1

</llo_original>
